<compile_context>
chip_gen: v7x
topology: tpu7x:2x2x1
jax: 0.10.0
libtpu: 0.0.40
codegen_flags: <defaults>
</compile_context>

<pallas_src>
import jax
import jax.numpy as jnp
from jax.experimental import pallas as pl
from jax.experimental.pallas import tpu as pltpu


def mlp_kernel(x_ref, w1_ref, b1_ref, w2_ref, b2_ref, w3_ref, b3_ref, o_ref):
    # Layer 1: bf16 x bf16 -> f32 accumulate on the MXU; bias add + ReLU in f32 on the VPU.
    h1 = jnp.dot(x_ref[...], w1_ref[...], preferred_element_type=jnp.float32)
    h1 = jnp.maximum(h1 + b1_ref[...], 0.0)
    # Layer 2: cast the f32 activation back to bf16 so the dot stays on the fast MXU path.
    h2 = jnp.dot(h1.astype(jnp.bfloat16), w2_ref[...],
                 preferred_element_type=jnp.float32)
    h2 = jnp.maximum(h2 + b2_ref[...], 0.0)
    # Output layer (no activation).
    y = jnp.dot(h2.astype(jnp.bfloat16), w3_ref[...],
                preferred_element_type=jnp.float32)
    o_ref[...] = (y + b3_ref[...]).astype(o_ref.dtype)


def _round_up(n, m):
    return ((n + m - 1) // m) * m


def mlp_forward(x, params, *, tile_b=4096, min_grid_steps=2):
    """Fused 3-layer MLP forward. Streams x/out over a batch grid; weights stay resident."""
    w1, b1, w2, b2, w3, b3 = params
    B, in_f = x.shape
    h1_f, h2_f, out_f = w1.shape[1], w2.shape[1], w3.shape[1]

    # bf16 operands for the MXU; biases stay f32 (the whole epilogue is f32).
    xb = x.astype(jnp.bfloat16)
    w1b, w2b, w3b = (w.astype(jnp.bfloat16) for w in (w1, w2, w3))

    # Adaptive, padding-minimizing batch tiling:
    #   steps = grid steps needed with the requested max tile,
    #   tb    = ceil(B / steps) rounded up to the 8-sublane granule.
    # Force >= min_grid_steps for medium/large batches so v7x can shard the
    # "parallel" axis across its 2 TensorCores (harmless on v5e/v6e).
    steps = max(1, pl.cdiv(B, tile_b))
    if steps < min_grid_steps and B >= min_grid_steps * 1024:
        steps = min_grid_steps
    tb = _round_up(pl.cdiv(B, steps), 8)
    b_pad = steps * tb
    if b_pad != B:
        xb = jnp.pad(xb, ((0, b_pad - B), (0, 0)))

    # Tiny weights/biases: fully resident across the whole grid.
    def resident(shape):
        return pl.BlockSpec(shape, lambda i: (0, 0))

    flops = 2 * b_pad * (in_f * h1_f + h1_f * h2_f + h2_f * out_f)
    weight_bytes = (w1b.size + w2b.size + w3b.size) * 2 + (b1.size + b2.size + b3.size) * 4
    bytes_accessed = b_pad * in_f * 2 + b_pad * out_f * 4 + int(weight_bytes)

    out = pl.pallas_call(
        mlp_kernel,
        out_shape=jax.ShapeDtypeStruct((b_pad, out_f), jnp.float32),
        grid=(steps,),
        in_specs=[
            pl.BlockSpec((tb, in_f), lambda i: (i, 0)),   # stream x tiles
            resident(w1b.shape), resident(b1.shape),
            resident(w2b.shape), resident(b2.shape),
            resident(w3b.shape), resident(b3.shape),
        ],
        out_specs=pl.BlockSpec((tb, out_f), lambda i: (i, 0)),
        compiler_params=pltpu.CompilerParams(
            dimension_semantics=("parallel",)),           # 2-TC sharding on v7x
        cost_estimate=pl.CostEstimate(
            flops=int(flops), transcendentals=0, bytes_accessed=int(bytes_accessed)),
    )(xb, w1b, b1, w2b, b2, w3b, b3)
    return out[:B]


def init_params(key, input_features=14, hidden_layer1=24, hidden_layer2=21,
                output_features=2):
    """Deterministic init mimicking nn.Linear's uniform(-1/sqrt(fan_in), 1/sqrt(fan_in))."""
    def linear(key, fan_in, fan_out):
        kw, kb = jax.random.split(key)
        bound = 1.0 / jnp.sqrt(fan_in)
        w = jax.random.uniform(kw, (fan_in, fan_out), jnp.float32, -bound, bound)
        b = jax.random.uniform(kb, (1, fan_out), jnp.float32, -bound, bound)
        return w, b

    k1, k2, k3 = jax.random.split(key, 3)
    w1, b1 = linear(k1, input_features, hidden_layer1)
    w2, b2 = linear(k2, hidden_layer1, hidden_layer2)
    w3, b3 = linear(k3, hidden_layer2, output_features)
    return (w1, b1, w2, b2, w3, b3)


def reference_forward_f32(x, params):
    w1, b1, w2, b2, w3, b3 = params
    h1 = jnp.maximum(x @ w1 + b1, 0.0)
    h2 = jnp.maximum(h1 @ w2 + b2, 0.0)
    return h2 @ w3 + b3


def reference_forward_bf16(x, params):
    """Same bf16-operand / f32-accumulate recipe as the kernel (tight-tolerance check)."""
    w1, b1, w2, b2, w3, b3 = params
    h1 = jnp.dot(x.astype(jnp.bfloat16), w1.astype(jnp.bfloat16),
                 preferred_element_type=jnp.float32) + b1
    h1 = jnp.maximum(h1, 0.0)
    h2 = jnp.dot(h1.astype(jnp.bfloat16), w2.astype(jnp.bfloat16),
                 preferred_element_type=jnp.float32) + b2
    h2 = jnp.maximum(h2, 0.0)
    return jnp.dot(h2.astype(jnp.bfloat16), w3.astype(jnp.bfloat16),
                   preferred_element_type=jnp.float32) + b3


def _check(out, x, params, tag):
    ref32 = reference_forward_f32(x, params)
    ref16 = reference_forward_bf16(x, params)
    assert out.shape == ref32.shape, (tag, out.shape, ref32.shape)
    # Tight check vs a bf16-operand reference (validates the kernel itself).
    assert jnp.allclose(out, ref16, atol=5e-3, rtol=5e-3), f"mismatch vs bf16 ref ({tag})"
    # Loose check vs the full-f32 reference (validates semantics vs the PyTorch module).
    assert jnp.allclose(out, ref32, atol=3e-2, rtol=3e-2), f"mismatch vs f32 ref ({tag})"


if __name__ == "__main__":
    key = jax.random.PRNGKey(0)
    kx, kp, kx2, kx3 = jax.random.split(key, 4)

    input_features = 14
    params = init_params(kp)

    # Small-shape check (single grid step, clamped 8-row tile).
    batch = 8
    x = jax.random.normal(kx, (batch, input_features), jnp.float32)
    out = jax.block_until_ready(mlp_forward(x, params))
    _check(out, x, params, "small batch")

    # Adaptive-tiling / multi-step check: B=1040 with a small max tile -> 3 steps of 352 rows
    # (16 padded rows instead of the previous 496).
    batch2 = 1040
    x2 = jax.random.normal(kx2, (batch2, input_features), jnp.float32)
    out2 = jax.block_until_ready(mlp_forward(x2, params, tile_b=512))
    _check(out2, x2, params, "adaptive gridded batch")

    # Medium batch with default tile -> forced 2-step grid (v7x dual-TC path), zero padding.
    batch3 = 4096
    x3 = jax.random.normal(kx3, (batch3, input_features), jnp.float32)
    out3 = jax.block_until_ready(mlp_forward(x3, params))
    _check(out3, x3, params, "two-step grid")

    print("KERNEL_OK")
</pallas_src>

<mosaic_0001>
module attributes {stable_mosaic.version = 11 : i64} {
  func.func @mlp_kernel(%arg0: i32, %arg1: memref<8x14xbf16, #tpu.memory_space<vmem>>, %arg2: memref<14x24xbf16, #tpu.memory_space<vmem>>, %arg3: memref<1x24xf32, #tpu.memory_space<vmem>>, %arg4: memref<24x21xbf16, #tpu.memory_space<vmem>>, %arg5: memref<1x21xf32, #tpu.memory_space<vmem>>, %arg6: memref<21x2xbf16, #tpu.memory_space<vmem>>, %arg7: memref<1x2xf32, #tpu.memory_space<vmem>>, %arg8: memref<8x2xf32, #tpu.memory_space<vmem>>) attributes {dimension_semantics = [#tpu.dimension_semantics<parallel>], iteration_bounds = array<i64: 1>, scalar_prefetch = 0 : i64, scratch_operands = 0 : i64, tpu.core_type = #tpu.core_type<tc>, window_params = [{transform_indices = @transform_0, window_bounds = array<i64: 8, 14>}, {pipeline_mode = #tpu.pipeline_mode<synchronous>, transform_indices = @transform_1, window_bounds = array<i64: 14, 24>}, {pipeline_mode = #tpu.pipeline_mode<synchronous>, transform_indices = @transform_2, window_bounds = array<i64: 1, 24>}, {pipeline_mode = #tpu.pipeline_mode<synchronous>, transform_indices = @transform_3, window_bounds = array<i64: 24, 21>}, {pipeline_mode = #tpu.pipeline_mode<synchronous>, transform_indices = @transform_4, window_bounds = array<i64: 1, 21>}, {pipeline_mode = #tpu.pipeline_mode<synchronous>, transform_indices = @transform_5, window_bounds = array<i64: 21, 2>}, {pipeline_mode = #tpu.pipeline_mode<synchronous>, transform_indices = @transform_6, window_bounds = array<i64: 1, 2>}, {transform_indices = @transform_7, window_bounds = array<i64: 8, 2>}]} {
    %c0 = arith.constant 0 : index
    %c0_0 = arith.constant 0 : index
    %0 = vector.load %arg1[%c0, %c0_0] : memref<8x14xbf16, #tpu.memory_space<vmem>>, vector<8x14xbf16>
    %c0_1 = arith.constant 0 : index
    %c0_2 = arith.constant 0 : index
    %1 = vector.load %arg2[%c0_1, %c0_2] : memref<14x24xbf16, #tpu.memory_space<vmem>>, vector<14x24xbf16>
    %cst = arith.constant dense<0.000000e+00> : vector<8x24xf32>
    %2 = tpu.matmul %0, %1, %cst {dimension_numbers = #tpu.dot_dimension_numbers<[1], [0], [0], [1], [0, 0, 1, 1], [], []>} : vector<8x14xbf16>, vector<14x24xbf16>, vector<8x24xf32> -> vector<8x24xf32>
    %c0_3 = arith.constant 0 : index
    %c0_4 = arith.constant 0 : index
    %3 = vector.load %arg3[%c0_3, %c0_4] : memref<1x24xf32, #tpu.memory_space<vmem>>, vector<1x24xf32>
    %4 = vector.broadcast %3 : vector<1x24xf32> to vector<8x24xf32>
    %5 = arith.addf %2, %4 : vector<8x24xf32>
    %cst_5 = arith.constant 0.000000e+00 : f32
    %6 = vector.broadcast %cst_5 : f32 to vector<8x24xf32>
    %7 = arith.maximumf %5, %6 : vector<8x24xf32>
    %8 = arith.truncf %7 : vector<8x24xf32> to vector<8x24xbf16>
    %c0_6 = arith.constant 0 : index
    %c0_7 = arith.constant 0 : index
    %9 = vector.load %arg4[%c0_6, %c0_7] : memref<24x21xbf16, #tpu.memory_space<vmem>>, vector<24x21xbf16>
    %cst_8 = arith.constant dense<0.000000e+00> : vector<8x21xf32>
    %10 = tpu.matmul %8, %9, %cst_8 {dimension_numbers = #tpu.dot_dimension_numbers<[1], [0], [0], [1], [0, 0, 1, 1], [], []>} : vector<8x24xbf16>, vector<24x21xbf16>, vector<8x21xf32> -> vector<8x21xf32>
    %c0_9 = arith.constant 0 : index
    %c0_10 = arith.constant 0 : index
    %11 = vector.load %arg5[%c0_9, %c0_10] : memref<1x21xf32, #tpu.memory_space<vmem>>, vector<1x21xf32>
    %12 = vector.broadcast %11 : vector<1x21xf32> to vector<8x21xf32>
    %13 = arith.addf %10, %12 : vector<8x21xf32>
    %cst_11 = arith.constant 0.000000e+00 : f32
    %14 = vector.broadcast %cst_11 : f32 to vector<8x21xf32>
    %15 = arith.maximumf %13, %14 : vector<8x21xf32>
    %16 = arith.truncf %15 : vector<8x21xf32> to vector<8x21xbf16>
    %c0_12 = arith.constant 0 : index
    %c0_13 = arith.constant 0 : index
    %17 = vector.load %arg6[%c0_12, %c0_13] : memref<21x2xbf16, #tpu.memory_space<vmem>>, vector<21x2xbf16>
    %cst_14 = arith.constant dense<0.000000e+00> : vector<8x2xf32>
    %18 = tpu.matmul %16, %17, %cst_14 {dimension_numbers = #tpu.dot_dimension_numbers<[1], [0], [0], [1], [0, 0, 1, 1], [], []>} : vector<8x21xbf16>, vector<21x2xbf16>, vector<8x2xf32> -> vector<8x2xf32>
    %c0_15 = arith.constant 0 : index
    %c0_16 = arith.constant 0 : index
    %19 = vector.load %arg7[%c0_15, %c0_16] : memref<1x2xf32, #tpu.memory_space<vmem>>, vector<1x2xf32>
    %20 = vector.broadcast %19 : vector<1x2xf32> to vector<8x2xf32>
    %21 = arith.addf %18, %20 : vector<8x2xf32>
    %c0_17 = arith.constant 0 : index
    %c0_18 = arith.constant 0 : index
    %22 = vector.load %arg8[%c0_17, %c0_18] : memref<8x2xf32, #tpu.memory_space<vmem>>, vector<8x2xf32>
    tpu.vector_store %arg8[%c0_17, %c0_18], %21 {strides = array<i32>} : memref<8x2xf32, #tpu.memory_space<vmem>>, vector<8x2xf32>,
    return
  }
  func.func @transform_0(%arg0: i32) -> (i32, i32) {
    %c0_i32 = arith.constant 0 : i32
    %c0_i32_0 = arith.constant 0 : i32
    return %arg0, %c0_i32 : i32, i32
  }
  func.func @transform_1(%arg0: i32) -> (i32, i32) {
    %c0_i32 = arith.constant 0 : i32
    %c0_i32_0 = arith.constant 0 : i32
    %c0_i32_1 = arith.constant 0 : i32
    return %c0_i32, %c0_i32_0 : i32, i32
  }
  func.func @transform_2(%arg0: i32) -> (i32, i32) {
    %c0_i32 = arith.constant 0 : i32
    %c0_i32_0 = arith.constant 0 : i32
    %c0_i32_1 = arith.constant 0 : i32
    return %c0_i32, %c0_i32_0 : i32, i32
  }
  func.func @transform_3(%arg0: i32) -> (i32, i32) {
    %c0_i32 = arith.constant 0 : i32
    %c0_i32_0 = arith.constant 0 : i32
    %c0_i32_1 = arith.constant 0 : i32
    return %c0_i32, %c0_i32_0 : i32, i32
  }
  func.func @transform_4(%arg0: i32) -> (i32, i32) {
    %c0_i32 = arith.constant 0 : i32
    %c0_i32_0 = arith.constant 0 : i32
    %c0_i32_1 = arith.constant 0 : i32
    return %c0_i32, %c0_i32_0 : i32, i32
  }
  func.func @transform_5(%arg0: i32) -> (i32, i32) {
    %c0_i32 = arith.constant 0 : i32
    %c0_i32_0 = arith.constant 0 : i32
    %c0_i32_1 = arith.constant 0 : i32
    return %c0_i32, %c0_i32_0 : i32, i32
  }
  func.func @transform_6(%arg0: i32) -> (i32, i32) {
    %c0_i32 = arith.constant 0 : i32
    %c0_i32_0 = arith.constant 0 : i32
    %c0_i32_1 = arith.constant 0 : i32
    return %c0_i32, %c0_i32_0 : i32, i32
  }
  func.func @transform_7(%arg0: i32) -> (i32, i32) {
    %c0_i32 = arith.constant 0 : i32
    %c0_i32_0 = arith.constant 0 : i32
    return %arg0, %c0_i32 : i32, i32
  }
}

</mosaic_0001>

<llo_original>
// kernel: tpu_custom_call.1
$region0: #{tpu_custom_call.1}
  #allocation0 [shape = 'u32[]', space=smem, size = 0x4, offset = 0x4, fixed_abs, tag = 'smem constant byte address 0x4 - core index']
  #allocation1 [shape = 'u32[144,128]{1,0:T(1,128)}', space=vmem, size = 0x12000, scoped, tag = 'internal scratch']
  %s0 = inlined_call_operand.vmem [shape: bf16[8,14], index: 0, kind: input, shape index: {}]
  %s1 = inlined_call_operand.vmem [shape: bf16[14,24], index: 1, kind: input, shape index: {}]
  %s2 = inlined_call_operand.hbm [shape: f32[1,24], index: 2, kind: input, shape index: {}]
  %s3 = inlined_call_operand.vmem [shape: bf16[24,21], index: 3, kind: input, shape index: {}]
  %s4 = inlined_call_operand.vmem [shape: f32[1,21], index: 4, kind: input, shape index: {}]
  %s5 = inlined_call_operand.vmem [shape: bf16[21,2], index: 5, kind: input, shape index: {}]
  %s6 = inlined_call_operand.vmem [shape: f32[1,2], index: 6, kind: input, shape index: {}]
  %s7 = inlined_call_operand.vmem [shape: f32[8,2], index: 7, kind: output, shape index: {}]
  %s8 = sld [smem:[#allocation0]]
  $region42: #{tpu_custom_call.1} parent=0
    _
  %s10 = ssub.s32 1, %s8
  %s11 = scalar_select 0, %s10, %s8
  $region1: #{tpu_custom_call.1} parent=0
    #allocation2 [shape = 'u8[512]{0}', space=vmem, size = 0x400, scoped, tag = 'input window, operand 2, single buffered']
    #allocation3 [shape = 's32[1]{0}', space=sflag, size = 0x4, scoped, tag = 'scoped memory for tpu_custom_call.1']
    %12 = vsyncpa [#allocation3], 0
    // Predicated region
    $region2: #{tpu_custom_call.1} parent=1 // pred_check
      _
    $region3: #{tpu_custom_call.1} parent=1 // pred_check_branch
      %14 = sbr.rel (0) target = $region5
    $region4: #{tpu_custom_call.1} parent=1 // pred_region
      _
    $region5: #{tpu_custom_call.1} parent=1 // pred_fallthru
      _
    // Predicated region
    $region6: #{tpu_custom_call.1} parent=1 // pred_check
      _
    $region7: #{tpu_custom_call.1} parent=1 // pred_check_branch
      %16 = sbr.rel (0) target = $region9
    $region8: #{tpu_custom_call.1} parent=1 // pred_region
      _
    $region9: #{tpu_custom_call.1} parent=1 // pred_fallthru
      _
    // Predicated region
    $region10: #{tpu_custom_call.1} parent=1 // pred_check
      _
    $region11: #{tpu_custom_call.1} parent=1 // pred_check_branch
      %18 = sbr.rel (0) target = $region13
    $region12: #{tpu_custom_call.1} parent=1 // pred_region
      %s20 = ssub.s32 16, 16
      %21 = vsyncadd [#allocation3], %s20
      %s23 = sshll.u32 [#allocation2], 4
      %s24 = int_to_ptr.vmem [resolvable:$true] %s23
      %26 = dma.hbm_to_vmem [thread:$0]  %s2, 16, %s24, [#allocation3]
    $region13: #{tpu_custom_call.1} parent=1 // pred_fallthru
      _
    // Predicated region
    $region14: #{tpu_custom_call.1} parent=1 // pred_check
      _
    $region15: #{tpu_custom_call.1} parent=1 // pred_check_branch
      %28 = sbr.rel (0) target = $region17
    $region16: #{tpu_custom_call.1} parent=1 // pred_region
      _
    $region17: #{tpu_custom_call.1} parent=1 // pred_fallthru
      _
    // Predicated region
    $region18: #{tpu_custom_call.1} parent=1 // pred_check
      _
    $region19: #{tpu_custom_call.1} parent=1 // pred_check_branch
      %30 = sbr.rel (0) target = $region21
    $region20: #{tpu_custom_call.1} parent=1 // pred_region
      _
    $region21: #{tpu_custom_call.1} parent=1 // pred_fallthru
      _
    // Predicated region
    $region22: #{tpu_custom_call.1} parent=1 // pred_check
      _
    $region23: #{tpu_custom_call.1} parent=1 // pred_check_branch
      %32 = sbr.rel (0) target = $region25
    $region24: #{tpu_custom_call.1} parent=1 // pred_region
      _
    $region25: #{tpu_custom_call.1} parent=1 // pred_fallthru
      _
    // Predicated region
    $region26: #{tpu_custom_call.1} parent=1 // pred_check
      _
    $region27: #{tpu_custom_call.1} parent=1 // pred_check_branch
      %34 = sbr.rel (0) target = $region29
    $region28: #{tpu_custom_call.1} parent=1 // pred_region
      _
    $region29: #{tpu_custom_call.1} parent=1 // pred_fallthru
      _
    // Predicated region
    $region30: #{tpu_custom_call.1} parent=1 // pred_check
      _
    $region31: #{tpu_custom_call.1} parent=1 // pred_check_branch
      %36 = sbr.rel (0) target = $region33
    $region32: #{tpu_custom_call.1} parent=1 // pred_region
      %37 = dma.done [#allocation3], 16
    $region33: #{tpu_custom_call.1} parent=1 // pred_fallthru
      _
    %v39 = vld [vmem:[%s0] sm:$0xf]
    %v40 = vld [vmem:[%s1] sm:$0xf]
    %v41 = vld [vmem:[%s1 + $0x4] sm:$0x7]
    %v42 = vld [vmem:[#allocation2] sm:$0x1]
    %v44 = vlaneseq
    %v45 = vshrl.u32 %v44, 7
    %v46 = vsub.s32 0, %v45
    %v47 = vrot.slane %v42, %v46
    %v51 = vunpack.c.l.b16 %v40
    %v52 = vunpack.c.l.b16 %v41
    %v53 = vpack.c.b16 %v52, %v51
    %vm54 = vcmask 113664
    %v56 = vsel %vm54, %v39, 0
    %vm58 = vcmask 1046528
    %v60 = vsel %vm58, %v53, 0
    %62 = vmatprep.subr.bf16.mxu0 0
    %63 = vmatpush1.bf16.msra.mxu0 %v60
    %64 = vmatprep.subr.bf16.mxu0 0
    %65 = vmatpush1.bf16.msra.mxu0 0
    %66 = vmatprep.subr.bf16.mxu0 0
    %67 = vmatpush1.bf16.msra.mxu0 0
    %68 = vmatprep.subr.bf16.mxu0 0
    %69 = vmatpush1.bf16.msra.mxu0 0
    %70 = vmatprep.subr.bf16.mxu0 0
    %71 = vmatpush1.bf16.msra.mxu0 0
    %72 = vmatprep.subr.bf16.mxu0 0
    %73 = vmatpush1.bf16.msra.mxu0 0
    %74 = vmatprep.subr.bf16.mxu0 0
    %75 = vmatpush1.bf16.msra.mxu0 0
    %76 = vmatprep.subr.bf16.mxu0 0
    %77 = vmatpush1.bf16.msra.mxu0 0
    %78 = vmatprep.subr.bf16.mxu0 0
    %79 = vmatpush1.bf16.msra.mxu0 0
    %80 = vmatprep.subr.bf16.mxu0 0
    %81 = vmatpush1.bf16.msra.mxu0 0
    %82 = vmatprep.subr.bf16.mxu0 0
    %83 = vmatpush1.bf16.msra.mxu0 0
    %84 = vmatprep.subr.bf16.mxu0 0
    %85 = vmatpush1.bf16.msra.mxu0 0
    %86 = vmatprep.subr.bf16.mxu0 0
    %87 = vmatpush1.bf16.msra.mxu0 0
    %88 = vmatprep.subr.bf16.mxu0 0
    %89 = vmatpush1.bf16.msra.mxu0 0
    %90 = vmatprep.subr.bf16.mxu0 0
    %91 = vmatpush1.bf16.msra.mxu0 0
    %92 = vmatprep.subr.bf16.mxu0 0
    %93 = vmatpush1.bf16.msra.mxu0 0
    %94 = vmatprep.mubr.bf16.mxu0 0
    %95 = vmatmul.mubr.bf16.gmra.mrb[0].mxu0 %v56
    %v96 = vpop.f32.mrb[0].mxu0
    %v97 = vadd.f32 %v47, %v96
    %v98 = vpop.f32.mrb[0].mxu0
    %v99 = vpop.f32.mrb[0].mxu0
    %v100 = vpop.f32.mrb[0].mxu0
    %101 = vdwg.mxu0
    %v102 = vmax.f32 %v97, 0.0
    %v103 = vpack.c.bf16 %v102, %v102
    %v104 = vld [vmem:[%s3] sm:$0xf]
    %v105 = vld [vmem:[%s3 + $0x4] sm:$0xf]
    %v106 = vld [vmem:[%s3 + $0x8] sm:$0xf]
    %v107 = vld [vmem:[%s4] sm:$0x1]
    %v109 = vlaneseq
    %v110 = vshrl.u32 %v109, 7
    %v111 = vsub.s32 0, %v110
    %v112 = vrot.slane %v107, %v111
    %v117 = vunpack.c.l.b16 %v104
    %v118 = vunpack.c.l.b16 %v105
    %v119 = vunpack.c.l.b16 %v106
    %v120 = vpack.c.b16 %v118, %v117
    %v121 = vpack.c.b16 %v119, %v119
    %vm123 = vcmask 195584
    %v125 = vsel %vm123, %v103, 0
    %vm127 = vcmask 1043456
    %v129 = vsel %vm127, %v121, 0
    %131 = vmatprep.subr.bf16.mxu0 0
    %132 = vmatpush1.bf16.msra.mxu0 %v120
    %133 = vmatprep.subr.bf16.mxu0 0
    %134 = vmatpush1.bf16.msra.mxu0 %v129
    %135 = vmatprep.subr.bf16.mxu0 0
    %136 = vmatpush1.bf16.msra.mxu0 0
    %137 = vmatprep.subr.bf16.mxu0 0
    %138 = vmatpush1.bf16.msra.mxu0 0
    %139 = vmatprep.subr.bf16.mxu0 0
    %140 = vmatpush1.bf16.msra.mxu0 0
    %141 = vmatprep.subr.bf16.mxu0 0
    %142 = vmatpush1.bf16.msra.mxu0 0
    %143 = vmatprep.subr.bf16.mxu0 0
    %144 = vmatpush1.bf16.msra.mxu0 0
    %145 = vmatprep.subr.bf16.mxu0 0
    %146 = vmatpush1.bf16.msra.mxu0 0
    %147 = vmatprep.subr.bf16.mxu0 0
    %148 = vmatpush1.bf16.msra.mxu0 0
    %149 = vmatprep.subr.bf16.mxu0 0
    %150 = vmatpush1.bf16.msra.mxu0 0
    %151 = vmatprep.subr.bf16.mxu0 0
    %152 = vmatpush1.bf16.msra.mxu0 0
    %153 = vmatprep.subr.bf16.mxu0 0
    %154 = vmatpush1.bf16.msra.mxu0 0
    %155 = vmatprep.subr.bf16.mxu0 0
    %156 = vmatpush1.bf16.msra.mxu0 0
    %157 = vmatprep.subr.bf16.mxu0 0
    %158 = vmatpush1.bf16.msra.mxu0 0
    %159 = vmatprep.subr.bf16.mxu0 0
    %160 = vmatpush1.bf16.msra.mxu0 0
    %161 = vmatprep.subr.bf16.mxu0 0
    %162 = vmatpush1.bf16.msra.mxu0 0
    %163 = vmatprep.mubr.bf16.mxu0 0
    %164 = vmatmul.mubr.bf16.gmra.mrb[0].mxu0 %v125
    %v165 = vpop.f32.mrb[0].mxu0
    %v166 = vadd.f32 %v112, %v165
    %v167 = vpop.f32.mrb[0].mxu0
    %v168 = vpop.f32.mrb[0].mxu0
    %v169 = vpop.f32.mrb[0].mxu0
    %170 = vdwg.mxu0
    %v171 = vmax.f32 %v166, 0.0
    %v172 = vpack.c.bf16 %v171, %v171
    %v173 = vld [vmem:[%s5] sm:$0xf]
    %v174 = vld [vmem:[%s5 + $0x4] sm:$0xf]
    %v175 = vld [vmem:[%s5 + $0x8] sm:$0x7]
    %v176 = vld [vmem:[%s6] sm:$0x1]
    %v178 = vlaneseq
    %v179 = vshrl.u32 %v178, 7
    %v180 = vsub.s32 0, %v179
    %v181 = vrot.slane %v176, %v180
    %v186 = vunpack.c.l.b16 %v173
    %v187 = vunpack.c.l.b16 %v174
    %v188 = vunpack.c.l.b16 %v175
    %v189 = vpack.c.b16 %v187, %v186
    %v190 = vpack.c.b16 %v188, %v188
    %vm192 = vcmask 171008
    %v194 = vsel %vm192, %v172, 0
    %vm196 = vcmask 1041408
    %vm197 = vcmask 1042432
    %v198 = vsel %vm196, 4294967295, 65535
    %v199 = vsel %vm197, %v198, 0
    %v201 = vand.u32 %v190, %v199
    %203 = vmatprep.subr.bf16.mxu0 0
    %204 = vmatpush1.bf16.msra.mxu0 %v189
    %205 = vmatprep.subr.bf16.mxu0 0
    %206 = vmatpush1.bf16.msra.mxu0 %v201
    %207 = vmatprep.subr.bf16.mxu0 0
    %208 = vmatpush1.bf16.msra.mxu0 0
    %209 = vmatprep.subr.bf16.mxu0 0
    %210 = vmatpush1.bf16.msra.mxu0 0
    %211 = vmatprep.subr.bf16.mxu0 0
    %212 = vmatpush1.bf16.msra.mxu0 0
    %213 = vmatprep.subr.bf16.mxu0 0
    %214 = vmatpush1.bf16.msra.mxu0 0
    %215 = vmatprep.subr.bf16.mxu0 0
    %216 = vmatpush1.bf16.msra.mxu0 0
    %217 = vmatprep.subr.bf16.mxu0 0
    %218 = vmatpush1.bf16.msra.mxu0 0
    %219 = vmatprep.subr.bf16.mxu0 0
    %220 = vmatpush1.bf16.msra.mxu0 0
    %221 = vmatprep.subr.bf16.mxu0 0
    %222 = vmatpush1.bf16.msra.mxu0 0
    %223 = vmatprep.subr.bf16.mxu0 0
    %224 = vmatpush1.bf16.msra.mxu0 0
    %225 = vmatprep.subr.bf16.mxu0 0
    %226 = vmatpush1.bf16.msra.mxu0 0
    %227 = vmatprep.subr.bf16.mxu0 0
    %228 = vmatpush1.bf16.msra.mxu0 0
    %229 = vmatprep.subr.bf16.mxu0 0
    %230 = vmatpush1.bf16.msra.mxu0 0
    %231 = vmatprep.subr.bf16.mxu0 0
    %232 = vmatpush1.bf16.msra.mxu0 0
    %233 = vmatprep.subr.bf16.mxu0 0
    %234 = vmatpush1.bf16.msra.mxu0 0
    %235 = vmatprep.mubr.bf16.mxu0 0
    %236 = vmatmul.mubr.bf16.gmra.mrb[0].mxu0 %v194
    %v237 = vpop.f32.mrb[0].mxu0
    %v238 = vadd.f32 %v181, %v237
    %v239 = vpop.f32.mrb[0].mxu0
    %v240 = vpop.f32.mrb[0].mxu0
    %v241 = vpop.f32.mrb[0].mxu0
    %242 = vdwg.mxu0
    %vm243 = vcmask 15360
    %244 = vst.msk [vmem:[%s7] sm:$0xff] %vm243, %v238
    // Predicated region
    $region34: #{tpu_custom_call.1} parent=1 // pred_check
      _
    $region35: #{tpu_custom_call.1} parent=1 // pred_check_branch
      %246 = sbr.rel (0) target = $region37
    $region36: #{tpu_custom_call.1} parent=1 // pred_region
      _
    $region37: #{tpu_custom_call.1} parent=1 // pred_fallthru
      _
    // Predicated region
    $region38: #{tpu_custom_call.1} parent=1 // pred_check
      _
    $region39: #{tpu_custom_call.1} parent=1 // pred_check_branch
      %248 = sbr.rel (0) target = $region41
    $region40: #{tpu_custom_call.1} parent=1 // pred_region
      _
    $region41: #{tpu_custom_call.1} parent=1 // pred_fallthru
      _
    %249 = vsyncpa [#allocation3], 1

</llo_original>
